<compile_context>
chip_gen: v7x
topology: tpu7x:2x2x1
jax: 0.10.0
libtpu: 0.0.40
codegen_flags: <defaults>
</compile_context>

<pallas_src>
import functools
import math

import jax
import jax.numpy as jnp
from jax import lax
from jax.experimental import pallas as pl
from jax.experimental.pallas import tpu as pltpu


# ---------------------------------------------------------------------------
# Small helpers
# ---------------------------------------------------------------------------
def _round_up(x: int, m: int) -> int:
    return ((x + m - 1) // m) * m


def _vmem_capacity_bytes() -> int:
    try:
        return int(pltpu.get_tpu_info().vmem_capacity_bytes)
    except Exception:
        return 128 << 20


def _pick_kv_tile(sk: int, cap: int = 512) -> int:
    """Largest Sk tile <= cap that divides sk and is a multiple of 8."""
    if sk <= cap:
        return sk
    t = (min(cap, sk) // 8) * 8
    while t >= 8:
        if sk % t == 0:
            return t
        t -= 8
    return sk


def _attn_vmem_estimate(tq, sk, d, qdp, return_attn, cbytes) -> int:
    b = 2 * tq * qdp * cbytes                 # q block (double-buffered)
    b += 2 * 2 * sk * d * cbytes              # ke + ve blocks
    b += 2 * (qdp * d * cbytes + d * 4)       # wq + bq
    b += 2 * tq * d * 4                       # ctx out
    if return_attn:
        b += 2 * tq * sk * 4                  # attn out
    b += 8 * tq * sk * 4                      # score / p / temps headroom
    b += 4 * tq * d * 4                       # qe / misc headroom
    return b


def _prepass_vmem_estimate(ts, kdp, vdp, d, cbytes) -> int:
    b = 2 * ts * (kdp + vdp) * cbytes         # k + v blocks
    b += 2 * (kdp + vdp) * d * cbytes         # wk + wv
    b += 4 * d * 4                            # biases
    b += 2 * 2 * ts * d * cbytes              # ke + ve out blocks
    b += 4 * ts * d * 4                       # f32 temps headroom
    return b


# ---------------------------------------------------------------------------
# Kernels
# ---------------------------------------------------------------------------
def _extract_kv_kernel(k_ref, v_ref, wk_ref, bk_ref, wv_ref, bv_ref,
                       ke_ref, ve_ref):
    """ke = relu(k @ Wk + bk), ve = relu(v @ Wv + bv) — one (batch, Sk-tile)."""
    ke = jnp.dot(k_ref[0], wk_ref[...],
                 preferred_element_type=jnp.float32) + bk_ref[...]
    ke_ref[0] = jnp.maximum(ke, 0.0).astype(ke_ref.dtype)
    ve = jnp.dot(v_ref[0], wv_ref[...],
                 preferred_element_type=jnp.float32) + bv_ref[...]
    ve_ref[0] = jnp.maximum(ve, 0.0).astype(ve_ref.dtype)


def _attn_kernel(q_ref, ke_ref, ve_ref, wq_ref, bq_ref, ctx_ref, *maybe_attn,
                 valid_k: int, compute_dtype):
    attn_ref = maybe_attn[0] if maybe_attn else None

    # Query extractor (scale 1/sqrt(D) pre-folded into wq/bq).
    qe = jnp.dot(q_ref[0].astype(compute_dtype), wq_ref[...],
                 preferred_element_type=jnp.float32) + bq_ref[...]
    qe = jnp.maximum(qe, 0.0).astype(compute_dtype)          # (TQ, D) bf16

    ke = ke_ref[0]                                           # (Sk, D) bf16
    ve = ve_ref[0]                                           # (Sk, D) bf16

    # scores = qe @ ke^T  (contraction on the last dim of both operands).
    scores = lax.dot_general(qe, ke, (((1,), (1,)), ((), ())),
                             preferred_element_type=jnp.float32)  # (TQ, Sk) f32

    # Mask padded key columns (exact: padded attn weights become exactly 0).
    if valid_k < scores.shape[-1]:
        col = lax.broadcasted_iota(jnp.int32, scores.shape, 1)
        scores = jnp.where(col < valid_k, scores, -jnp.inf)

    # Numerically-stable softmax, all statistics in f32; exact normalization.
    scores = scores - jnp.max(scores, axis=-1, keepdims=True)
    p = jnp.exp(scores)
    inv = 1.0 / jnp.sum(p, axis=-1, keepdims=True)
    p = p * inv                                              # (TQ, Sk) f32

    if attn_ref is not None:
        attn_ref[0] = p.astype(attn_ref.dtype)
    ctx_ref[0] = jnp.dot(p.astype(compute_dtype), ve,
                         preferred_element_type=jnp.float32).astype(ctx_ref.dtype)


# ---------------------------------------------------------------------------
# Host-side parameter preparation (call once, reuse)
# ---------------------------------------------------------------------------
def prepare_params(params, *, compute_dtype=jnp.bfloat16, feature_pad=128):
    """Transpose weights to (in, out), fold the 1/sqrt(D) scale into the query
    extractor, zero-pad in-dims to a multiple of `feature_pad`, cast to the
    compute dtype.  Do this once per parameter set and reuse the result."""
    D = params["wq"].shape[0]
    scale = 1.0 / math.sqrt(D)

    def prep_w(w, fold):
        in_dim = w.shape[1]
        in_pad = _round_up(in_dim, feature_pad)
        wt = jnp.asarray(w, jnp.float32).T * fold            # (in, D)
        if in_pad != in_dim:
            wt = jnp.pad(wt, ((0, in_pad - in_dim), (0, 0)))
        return wt.astype(compute_dtype), in_dim, in_pad

    wq_t, q_dim, q_pad = prep_w(params["wq"], scale)
    wk_t, k_dim, k_pad = prep_w(params["wk"], 1.0)
    wv_t, v_dim, v_pad = prep_w(params["wv"], 1.0)
    return {
        "wq_t": wq_t,
        "bq": (jnp.asarray(params["bq"], jnp.float32) * scale).reshape(1, D),
        "wk_t": wk_t, "bk": jnp.asarray(params["bk"], jnp.float32).reshape(1, D),
        "wv_t": wv_t, "bv": jnp.asarray(params["bv"], jnp.float32).reshape(1, D),
        "d_model": D,
        "compute_dtype": compute_dtype,
        "dims": (q_dim, k_dim, v_dim),
        "padded_dims": (q_pad, k_pad, v_pad),
    }


# ---------------------------------------------------------------------------
# Wrapper
# ---------------------------------------------------------------------------
def sdpa_with_extractors(q, k, v, params, *, q_tile=None, return_attn=True,
                         compute_dtype=jnp.bfloat16):
    """q: (B,Sq,q_dim), k: (B,Sk,k_dim), v: (B,Sk,v_dim).

    `params` is either the raw PyTorch-layout dict (w*: (d_model, in), b*:
    (d_model,)) or the output of prepare_params.  Returns (ctx, attn) or just
    ctx when return_attn=False."""
    if "wq_t" not in params:
        params = prepare_params(params, compute_dtype=compute_dtype)
    compute_dtype = params["compute_dtype"]
    cbytes = jnp.dtype(compute_dtype).itemsize

    D = params["d_model"]
    q_dim, k_dim, v_dim = params["dims"]
    qdp, kdp, vdp = params["padded_dims"]

    B, Sq, q_in = q.shape
    Bk, Sk, k_in = k.shape
    Bv, Sv, v_in = v.shape
    assert B == Bk == Bv and Sk == Sv
    assert q_in == q_dim and k_in == k_dim and v_in == v_dim

    cap = _vmem_capacity_bytes()
    cap_budget = int(cap * 0.85)          # ~56 MiB on v7x, ~109 MiB on v5e/v6e

    # Pad Sk to a lane-dense multiple of 128 (masked to -inf inside the kernel).
    sk_pad = _round_up(Sk, 128) if Sk > 128 else Sk

    # Generation/Sk-aware query tile, then shrink to fit the VMEM budget.
    if q_tile is None:
        if cap <= (64 << 20):                         # v7x-class (64 MiB VMEM)
            q_tile = 128 if (return_attn or sk_pad >= 2048) else 256
        else:                                         # v5e / v6e (128 MiB VMEM)
            q_tile = 512 if sk_pad <= 2048 else 256
    tq = max(8, (min(q_tile, _round_up(Sq, 8)) // 8) * 8)
    while tq > 8 and _attn_vmem_estimate(tq, sk_pad, D, qdp,
                                         return_attn, cbytes) > cap_budget:
        tq = max(8, ((tq // 2) // 8) * 8)
    sq_pad = _round_up(Sq, tq)

    # Host-side input prep: pad seq + feature dims, cast to the compute dtype.
    def prep_in(x, fpad, spad):
        x = jnp.asarray(x)
        pads = ((0, 0), (0, spad - x.shape[1]), (0, fpad - x.shape[2]))
        if any(p[1] for p in pads):
            x = jnp.pad(x, pads)
        return x.astype(compute_dtype)

    qp = prep_in(q, qdp, sq_pad)
    kp = prep_in(k, kdp, sk_pad)
    vp = prep_in(v, vdp, sk_pad)

    wq_t, bq = params["wq_t"], params["bq"]
    wk_t, bk = params["wk_t"], params["bk"]
    wv_t, bv = params["wv_t"], params["bv"]

    # ------------------------------------------------------------------ #
    # Prepass: ke/ve extractors -> bf16 HBM tensors (once per batch row). #
    # ------------------------------------------------------------------ #
    ts = _pick_kv_tile(sk_pad)
    prepass_vmem = min(
        max(int(_prepass_vmem_estimate(ts, kdp, vdp, D, cbytes) * 1.5), 16 << 20),
        cap_budget)
    prep_cost = pl.CostEstimate(
        flops=2 * B * sk_pad * (kdp + vdp) * D,
        transcendentals=0,
        bytes_accessed=int(B * sk_pad * (kdp + vdp) * cbytes
                           + (kdp + vdp) * D * cbytes + 2 * D * 4
                           + 2 * B * sk_pad * D * cbytes))

    ke, ve = pl.pallas_call(
        _extract_kv_kernel,
        out_shape=(jax.ShapeDtypeStruct((B, sk_pad, D), compute_dtype),
                   jax.ShapeDtypeStruct((B, sk_pad, D), compute_dtype)),
        grid_spec=pltpu.PrefetchScalarGridSpec(
            num_scalar_prefetch=0,
            grid=(B, sk_pad // ts),
            in_specs=[
                pl.BlockSpec((1, ts, kdp), lambda b, s: (b, s, 0)),
                pl.BlockSpec((1, ts, vdp), lambda b, s: (b, s, 0)),
                pl.BlockSpec((kdp, D), lambda b, s: (0, 0)),
                pl.BlockSpec((1, D), lambda b, s: (0, 0)),
                pl.BlockSpec((vdp, D), lambda b, s: (0, 0)),
                pl.BlockSpec((1, D), lambda b, s: (0, 0)),
            ],
            out_specs=[
                pl.BlockSpec((1, ts, D), lambda b, s: (b, s, 0)),
                pl.BlockSpec((1, ts, D), lambda b, s: (b, s, 0)),
            ],
        ),
        compiler_params=pltpu.CompilerParams(
            dimension_semantics=("parallel", "parallel"),
            vmem_limit_bytes=prepass_vmem),
        cost_estimate=prep_cost,
    )(kp, vp, wk_t, bk, wv_t, bv)

    # ------------------------------------------------------------------ #
    # Main attention kernel.                                              #
    # ------------------------------------------------------------------ #
    grid = (B, sq_pad // tq)
    main_vmem = min(
        max(int(_attn_vmem_estimate(tq, sk_pad, D, qdp, return_attn, cbytes)
                * 1.15) + (2 << 20), 32 << 20),
        cap_budget)
    main_cost = pl.CostEstimate(
        flops=2 * B * sq_pad * qdp * D + 4 * B * sq_pad * sk_pad * D,
        transcendentals=B * sq_pad * sk_pad,
        bytes_accessed=int(B * sq_pad * qdp * cbytes
                           + 2 * B * sk_pad * D * cbytes
                           + qdp * D * cbytes + D * 4
                           + B * sq_pad * D * 4
                           + (B * sq_pad * sk_pad * 4 if return_attn else 0)))

    in_specs = [
        pl.BlockSpec((1, tq, qdp), lambda b, t: (b, t, 0)),
        pl.BlockSpec((1, sk_pad, D), lambda b, t: (b, 0, 0)),  # no re-DMA per tile
        pl.BlockSpec((1, sk_pad, D), lambda b, t: (b, 0, 0)),
        pl.BlockSpec((qdp, D), lambda b, t: (0, 0)),
        pl.BlockSpec((1, D), lambda b, t: (0, 0)),
    ]
    kernel = functools.partial(_attn_kernel, valid_k=Sk,
                               compute_dtype=compute_dtype)

    if return_attn:
        out_shape = (jax.ShapeDtypeStruct((B, sq_pad, D), jnp.float32),
                     jax.ShapeDtypeStruct((B, sq_pad, sk_pad), jnp.float32))
        out_specs = [pl.BlockSpec((1, tq, D), lambda b, t: (b, t, 0)),
                     pl.BlockSpec((1, tq, sk_pad), lambda b, t: (b, t, 0))]
    else:
        out_shape = jax.ShapeDtypeStruct((B, sq_pad, D), jnp.float32)
        out_specs = pl.BlockSpec((1, tq, D), lambda b, t: (b, t, 0))

    result = pl.pallas_call(
        kernel,
        out_shape=out_shape,
        grid_spec=pltpu.PrefetchScalarGridSpec(
            num_scalar_prefetch=0,
            grid=grid,
            in_specs=in_specs,
            out_specs=out_specs,
        ),
        compiler_params=pltpu.CompilerParams(
            # No cross-tile state any more -> both axes independent (megacore
            # even at B=1 on v7x).
            dimension_semantics=("parallel", "parallel"),
            vmem_limit_bytes=main_vmem),
        cost_estimate=main_cost,
    )(qp, ke, ve, wq_t, bq)

    if return_attn:
        ctx, attn = result
        return ctx[:, :Sq], attn[:, :Sq, :Sk]
    return result[:, :Sq]


# ---------------------------------------------------------------------------
# Pure-JAX reference (PyTorch-layout params, identical math, f32)
# ---------------------------------------------------------------------------
def _reference(q, k, v, params):
    D = params["wq"].shape[0]

    def mlp(x, w, b):
        return jnp.maximum(x @ w.T + b, 0.0)

    qe = mlp(q, params["wq"], params["bq"])
    ke = mlp(k, params["wk"], params["bk"])
    ve = mlp(v, params["wv"], params["bv"])
    scores = jnp.einsum("bqd,bkd->bqk", qe, ke) / math.sqrt(D)
    attn = jax.nn.softmax(scores, axis=-1)
    ctx = jnp.einsum("bqk,bkd->bqd", attn, ve)
    return ctx, attn


def make_params(key, d_model, q_dim, k_dim, v_dim):
    ks = jax.random.split(key, 6)

    def init(kk, shape, fan_in):
        bound = 1.0 / math.sqrt(fan_in)
        return jax.random.uniform(kk, shape, jnp.float32, -bound, bound)

    return {
        "wq": init(ks[0], (d_model, q_dim), q_dim), "bq": init(ks[1], (d_model,), q_dim),
        "wk": init(ks[2], (d_model, k_dim), k_dim), "bk": init(ks[3], (d_model,), k_dim),
        "wv": init(ks[4], (d_model, v_dim), v_dim), "bv": init(ks[5], (d_model,), v_dim),
    }


if __name__ == "__main__":
    B, Sq, Skv = 2, 8, 8
    q_dim, k_dim, v_dim = 32, 16, 48
    d_model = 128   # lane-dense context output (multiple of 128)

    key = jax.random.PRNGKey(0)
    kq, kk, kv, kp = jax.random.split(key, 4)
    q = jax.random.normal(kq, (B, Sq, q_dim), dtype=jnp.float32)
    k = jax.random.normal(kk, (B, Skv, k_dim), dtype=jnp.float32)
    v = jax.random.normal(kv, (B, Skv, v_dim), dtype=jnp.float32)
    params = make_params(kp, d_model, q_dim, k_dim, v_dim)
    ref_ctx, ref_attn = _reference(q, k, v, params)

    # Strict-parity f32 path (exercises the same kernels, tight tolerance).
    prepped_f32 = prepare_params(params, compute_dtype=jnp.float32)
    ctx32, attn32 = sdpa_with_extractors(q, k, v, prepped_f32, return_attn=True)
    ctx32 = jax.block_until_ready(ctx32)
    attn32 = jax.block_until_ready(attn32)
    assert jnp.allclose(ctx32, ref_ctx, atol=1e-4, rtol=1e-4), \
        f"f32 ctx max err {float(jnp.max(jnp.abs(ctx32 - ref_ctx)))}"
    assert jnp.allclose(attn32, ref_attn, atol=1e-4, rtol=1e-4), \
        f"f32 attn max err {float(jnp.max(jnp.abs(attn32 - ref_attn)))}"

    # Fast bf16 MXU path (default); f32 accumulation / f32 softmax statistics.
    prepped_bf16 = prepare_params(params)           # bf16 compute dtype
    ctx, attn = sdpa_with_extractors(q, k, v, prepped_bf16, return_attn=True)
    ctx = jax.block_until_ready(ctx)
    attn = jax.block_until_ready(attn)
    assert jnp.allclose(ctx, ref_ctx, atol=5e-2, rtol=5e-2), \
        f"bf16 ctx max err {float(jnp.max(jnp.abs(ctx - ref_ctx)))}"
    assert jnp.allclose(attn, ref_attn, atol=5e-2, rtol=5e-2), \
        f"bf16 attn max err {float(jnp.max(jnp.abs(attn - ref_attn)))}"

    # Cheaper variant: skip the B*Sq*Sk attention-weight writeback when unused.
    ctx_only = jax.block_until_ready(
        sdpa_with_extractors(q, k, v, prepped_bf16, return_attn=False))
    assert jnp.allclose(ctx_only, ref_ctx, atol=5e-2, rtol=5e-2)

    print("KERNEL_OK")
</pallas_src>

<mosaic_0001>
module attributes {stable_mosaic.version = 11 : i64} {
  func.func @_extract_kv_kernel(%arg0: i32, %arg1: i32, %arg2: memref<1x8x128xf32, #tpu.memory_space<vmem>>, %arg3: memref<1x8x128xf32, #tpu.memory_space<vmem>>, %arg4: memref<128x128xf32, #tpu.memory_space<vmem>>, %arg5: memref<1x128xf32, #tpu.memory_space<vmem>>, %arg6: memref<128x128xf32, #tpu.memory_space<vmem>>, %arg7: memref<1x128xf32, #tpu.memory_space<vmem>>, %arg8: memref<1x8x128xf32, #tpu.memory_space<vmem>>, %arg9: memref<1x8x128xf32, #tpu.memory_space<vmem>>) attributes {dimension_semantics = [#tpu.dimension_semantics<parallel>, #tpu.dimension_semantics<parallel>], iteration_bounds = array<i64: 2, 1>, scalar_prefetch = 0 : i64, scratch_operands = 0 : i64, tpu.core_type = #tpu.core_type<tc>, window_params = [{transform_indices = @transform_0, window_bounds = array<i64: 1, 8, 128>}, {transform_indices = @transform_1, window_bounds = array<i64: 1, 8, 128>}, {pipeline_mode = #tpu.pipeline_mode<synchronous>, transform_indices = @transform_2, window_bounds = array<i64: 128, 128>}, {pipeline_mode = #tpu.pipeline_mode<synchronous>, transform_indices = @transform_3, window_bounds = array<i64: 1, 128>}, {pipeline_mode = #tpu.pipeline_mode<synchronous>, transform_indices = @transform_4, window_bounds = array<i64: 128, 128>}, {pipeline_mode = #tpu.pipeline_mode<synchronous>, transform_indices = @transform_5, window_bounds = array<i64: 1, 128>}, {transform_indices = @transform_6, window_bounds = array<i64: 1, 8, 128>}, {transform_indices = @transform_7, window_bounds = array<i64: 1, 8, 128>}]} {
    %c0 = arith.constant 0 : index
    %c0_0 = arith.constant 0 : index
    %c0_1 = arith.constant 0 : index
    %0 = vector.load %arg2[%c0, %c0_0, %c0_1] : memref<1x8x128xf32, #tpu.memory_space<vmem>>, vector<1x8x128xf32>
    %1 = vector.shape_cast %0 : vector<1x8x128xf32> to vector<8x128xf32>
    %c0_2 = arith.constant 0 : index
    %c0_3 = arith.constant 0 : index
    %2 = vector.load %arg4[%c0_2, %c0_3] : memref<128x128xf32, #tpu.memory_space<vmem>>, vector<128x128xf32>
    %cst = arith.constant dense<0.000000e+00> : vector<8x128xf32>
    %3 = tpu.matmul %1, %2, %cst {dimension_numbers = #tpu.dot_dimension_numbers<[1], [0], [0], [1], [0, 0, 1, 1], [], []>} : vector<8x128xf32>, vector<128x128xf32>, vector<8x128xf32> -> vector<8x128xf32>
    %c0_4 = arith.constant 0 : index
    %c0_5 = arith.constant 0 : index
    %4 = vector.load %arg5[%c0_4, %c0_5] : memref<1x128xf32, #tpu.memory_space<vmem>>, vector<1x128xf32>
    %5 = vector.broadcast %4 : vector<1x128xf32> to vector<8x128xf32>
    %6 = arith.addf %3, %5 : vector<8x128xf32>
    %cst_6 = arith.constant 0.000000e+00 : f32
    %7 = vector.broadcast %cst_6 : f32 to vector<8x128xf32>
    %8 = arith.maximumf %6, %7 : vector<8x128xf32>
    %c0_7 = arith.constant 0 : index
    %c0_8 = arith.constant 0 : index
    %c0_9 = arith.constant 0 : index
    %9 = vector.load %arg8[%c0_7, %c0_8, %c0_9] : memref<1x8x128xf32, #tpu.memory_space<vmem>>, vector<1x8x128xf32>
    %10 = vector.shape_cast %9 : vector<1x8x128xf32> to vector<8x128xf32>
    %11 = vector.shape_cast %8 : vector<8x128xf32> to vector<1x8x128xf32>
    tpu.vector_store %arg8[%c0_7, %c0_8, %c0_9], %11 {strides = array<i32>} : memref<1x8x128xf32, #tpu.memory_space<vmem>>, vector<1x8x128xf32>,
    %c0_10 = arith.constant 0 : index
    %c0_11 = arith.constant 0 : index
    %c0_12 = arith.constant 0 : index
    %12 = vector.load %arg3[%c0_10, %c0_11, %c0_12] : memref<1x8x128xf32, #tpu.memory_space<vmem>>, vector<1x8x128xf32>
    %13 = vector.shape_cast %12 : vector<1x8x128xf32> to vector<8x128xf32>
    %c0_13 = arith.constant 0 : index
    %c0_14 = arith.constant 0 : index
    %14 = vector.load %arg6[%c0_13, %c0_14] : memref<128x128xf32, #tpu.memory_space<vmem>>, vector<128x128xf32>
    %cst_15 = arith.constant dense<0.000000e+00> : vector<8x128xf32>
    %15 = tpu.matmul %13, %14, %cst_15 {dimension_numbers = #tpu.dot_dimension_numbers<[1], [0], [0], [1], [0, 0, 1, 1], [], []>} : vector<8x128xf32>, vector<128x128xf32>, vector<8x128xf32> -> vector<8x128xf32>
    %c0_16 = arith.constant 0 : index
    %c0_17 = arith.constant 0 : index
    %16 = vector.load %arg7[%c0_16, %c0_17] : memref<1x128xf32, #tpu.memory_space<vmem>>, vector<1x128xf32>
    %17 = vector.broadcast %16 : vector<1x128xf32> to vector<8x128xf32>
    %18 = arith.addf %15, %17 : vector<8x128xf32>
    %cst_18 = arith.constant 0.000000e+00 : f32
    %19 = vector.broadcast %cst_18 : f32 to vector<8x128xf32>
    %20 = arith.maximumf %18, %19 : vector<8x128xf32>
    %c0_19 = arith.constant 0 : index
    %c0_20 = arith.constant 0 : index
    %c0_21 = arith.constant 0 : index
    %21 = vector.load %arg9[%c0_19, %c0_20, %c0_21] : memref<1x8x128xf32, #tpu.memory_space<vmem>>, vector<1x8x128xf32>
    %22 = vector.shape_cast %21 : vector<1x8x128xf32> to vector<8x128xf32>
    %23 = vector.shape_cast %20 : vector<8x128xf32> to vector<1x8x128xf32>
    tpu.vector_store %arg9[%c0_19, %c0_20, %c0_21], %23 {strides = array<i32>} : memref<1x8x128xf32, #tpu.memory_space<vmem>>, vector<1x8x128xf32>,
    return
  }
  func.func @transform_0(%arg0: i32, %arg1: i32) -> (i32, i32, i32) {
    %c0_i32 = arith.constant 0 : i32
    %c0_i32_0 = arith.constant 0 : i32
    return %arg0, %arg1, %c0_i32 : i32, i32, i32
  }
  func.func @transform_1(%arg0: i32, %arg1: i32) -> (i32, i32, i32) {
    %c0_i32 = arith.constant 0 : i32
    %c0_i32_0 = arith.constant 0 : i32
    return %arg0, %arg1, %c0_i32 : i32, i32, i32
  }
  func.func @transform_2(%arg0: i32, %arg1: i32) -> (i32, i32) {
    %c0_i32 = arith.constant 0 : i32
    %c0_i32_0 = arith.constant 0 : i32
    %c0_i32_1 = arith.constant 0 : i32
    return %c0_i32, %c0_i32_0 : i32, i32
  }
  func.func @transform_3(%arg0: i32, %arg1: i32) -> (i32, i32) {
    %c0_i32 = arith.constant 0 : i32
    %c0_i32_0 = arith.constant 0 : i32
    %c0_i32_1 = arith.constant 0 : i32
    return %c0_i32, %c0_i32_0 : i32, i32
  }
  func.func @transform_4(%arg0: i32, %arg1: i32) -> (i32, i32) {
    %c0_i32 = arith.constant 0 : i32
    %c0_i32_0 = arith.constant 0 : i32
    %c0_i32_1 = arith.constant 0 : i32
    return %c0_i32, %c0_i32_0 : i32, i32
  }
  func.func @transform_5(%arg0: i32, %arg1: i32) -> (i32, i32) {
    %c0_i32 = arith.constant 0 : i32
    %c0_i32_0 = arith.constant 0 : i32
    %c0_i32_1 = arith.constant 0 : i32
    return %c0_i32, %c0_i32_0 : i32, i32
  }
  func.func @transform_6(%arg0: i32, %arg1: i32) -> (i32, i32, i32) {
    %c0_i32 = arith.constant 0 : i32
    %c0_i32_0 = arith.constant 0 : i32
    return %arg0, %arg1, %c0_i32 : i32, i32, i32
  }
  func.func @transform_7(%arg0: i32, %arg1: i32) -> (i32, i32, i32) {
    %c0_i32 = arith.constant 0 : i32
    %c0_i32_0 = arith.constant 0 : i32
    return %arg0, %arg1, %c0_i32 : i32, i32, i32
  }
}

</mosaic_0001>

<llo_original>
// kernel: tpu_custom_call.1
$region0: #{tpu_custom_call.1}
  #allocation0 [shape = 'u32[]', space=smem, size = 0x4, offset = 0x4, fixed_abs, tag = 'smem constant byte address 0x4 - core index']
  #allocation1 [shape = 'u32[144,128]{1,0:T(1,128)}', space=vmem, size = 0x12000, scoped, tag = 'internal scratch']
  %s0 = inlined_call_operand.hbm [shape: f32[2,8,128], index: 0, kind: input, shape index: {}]
  %s1 = inlined_call_operand.hbm [shape: f32[2,8,128], index: 1, kind: input, shape index: {}]
  %s2 = inlined_call_operand.hbm [shape: f32[128,128], index: 2, kind: input, shape index: {}]
  %s3 = inlined_call_operand.vmem [shape: f32[1,128], index: 3, kind: input, shape index: {}]
  %s4 = inlined_call_operand.hbm [shape: f32[128,128], index: 4, kind: input, shape index: {}]
  %s5 = inlined_call_operand.vmem [shape: f32[1,128], index: 5, kind: input, shape index: {}]
  %s6 = inlined_call_operand.hbm [shape: f32[2,8,128], index: 6, kind: output, shape index: {0}]
  %s7 = inlined_call_operand.hbm [shape: f32[2,8,128], index: 7, kind: output, shape index: {1}]
  %8 = xla_tuple %s6, %s7
  %s9 = sld [smem:[#allocation0]]
  $region81: #{tpu_custom_call.1} parent=0
    _
  %s11 = ssub.s32 1, %s9
  %s12 = scalar_select 0, %s11, %s9
  $region1: #{tpu_custom_call.1} parent=0
    #allocation2 [shape = 'u8[8192]{0}', space=vmem, size = 0x2000, scoped, tag = 'input window, operand 0']
    #allocation3 [shape = 's32[2]{0}', space=sflag, size = 0x8, scoped, tag = 'scoped memory for tpu_custom_call.1']
    #allocation4 [shape = 's32[2]{0}', space=sflag, size = 0x8, scoped, tag = 'scoped memory for tpu_custom_call.1']
    #allocation5 [shape = 'u8[8192]{0}', space=vmem, size = 0x2000, scoped, tag = 'input window, operand 1']
    #allocation6 [shape = 's32[2]{0}', space=sflag, size = 0x8, scoped, tag = 'scoped memory for tpu_custom_call.1']
    #allocation7 [shape = 'u8[65536]{0}', space=vmem, size = 0x10000, scoped, tag = 'input window, operand 2, single buffered']
    #allocation8 [shape = 'u8[65536]{0}', space=vmem, size = 0x10000, scoped, tag = 'input window, operand 4, single buffered']
    #allocation9 [shape = 's32[1]{0}', space=sflag, size = 0x4, scoped, tag = 'scoped memory for tpu_custom_call.1']
    #allocation10 [shape = 'u8[8192]{0}', space=vmem, size = 0x2000, scoped, tag = 'output window, operand 0']
    #allocation11 [shape = 'u8[8192]{0}', space=vmem, size = 0x2000, scoped, tag = 'output window, operand 1']
    #allocation12 [shape = 's32[2]{0}', space=sflag, size = 0x8, scoped, tag = 'scoped memory for tpu_custom_call.1']
    %13 = vsyncpa [#allocation3], 0
    %s14 = scalar_lea.sflag [#allocation3], 1
    %15 = vsyncpa %s14, 0
    %16 = vsyncpa [#allocation6], 0
    %s17 = scalar_lea.sflag [#allocation6], 1
    %18 = vsyncpa %s17, 0
    %19 = vsyncpa [#allocation9], 0
    %20 = vsyncpa [#allocation4], 0
    %s21 = scalar_lea.sflag [#allocation4], 1
    %22 = vsyncpa %s21, 0
    %23 = vsyncpa [#allocation12], 0
    %s24 = scalar_lea.sflag [#allocation12], 1
    %25 = vsyncpa %s24, 0
    loop: start=0, step=1, limit=4
    $region2: #{tpu_custom_call.1} parent=1 // loop_pre_header
      _
    $region3: #{tpu_custom_call.1} parent=1 // loop_header
      %s27 = sphi 0, %s31
      %p28 = scmp.ge.s32.totalorder %s27, 4
      %s34 = sphi 0, %s46
      %s35 = sphi 0, %s42
      %s36 = sphi 0, %s34
      %s37 = sphi 0, %s35
      %s38 = sphi 0, %s36
      %s39 = sphi 0, %s37
      %s51 = sphi 0, %s53
      %s54 = sphi 0, %s51
      %s55 = sphi 0, %s54
      %s71 = sphi 0, %s55
      %s79 = sphi 0, %s81
      %s82 = sphi 0, %s79
      %s83 = sphi 0, %s82
      %s99 = sphi 0, %s83
      %s103 = sphi 0, %s103
      %s105 = sphi 0, %s103
      %s106 = sphi 0, %s105
      %s120 = sphi 0, %s106
      %s124 = sphi 0, %s124
      %s126 = sphi 0, %s124
      %s127 = sphi 0, %s126
      %s141 = sphi 0, %s127
      %s145 = sphi 0, %s145
      %s147 = sphi 0, %s145
      %s148 = sphi 0, %s147
      %s162 = sphi 0, %s148
      %s166 = sphi 0, %s166
      %s168 = sphi 0, %s166
      %s169 = sphi 0, %s168
      %s183 = sphi 0, %s169
      %s191 = sphi 0, %s193
      %s194 = sphi 0, %s191
      %s195 = sphi 0, %s194
      %s211 = sphi 0, %s195
      %s219 = sphi 0, %s221
      %s222 = sphi 0, %s219
      %s223 = sphi 0, %s222
      %s239 = sphi 0, %s223
    $region4: #{tpu_custom_call.1} parent=1 // loop_header_branch
      %30 = sbr.rel (%p28) target = $region8
    $region5: #{tpu_custom_call.1} parent=1 // loop_body
      %s32 = ssub.s32 %s27, 1
      %s33 = ssub.s32 %s27, 2
      %s40 = sadd.s32 1, %s35
      %p41 = scmp.ge.s32.totalorder %s40, 1
      %s42 = scalar_select %p41, 0, %s40
      %s43 = sadd.s32 1, %s34
      %s44 = scalar_select %p41, %s43, %s34
      %p45 = scmp.ge.s32.totalorder %s44, 2
      %s46 = scalar_select %p45, 0, %s44
      %s47 = ssub.s32 %s34, %s46
      %s48 = ssub.s32 %s35, %s42
      %s49 = sor.u32 %s47, %s48
      %p50 = scmp.eq.s32.totalorder %s49, 0
      %s52 = sadd.s32 %s51, 1
      %s53 = scalar_select %p50, %s51, %s52
      %p56 = pneg %p50
      %p57 = scmp.eq.s32.totalorder %s27, 1
      %p58 = por %p56, %p57
      %p59 = scmp.ne.s32.totalorder %s51, %s54
      %p60 = scmp.eq.s32.totalorder %s27, 0
      %p61 = por %p59, %p60
      %p62 = scmp.ne.s32.totalorder %s51, %s54
      %p63 = scmp.eq.s32.totalorder %s32, 1
      %p64 = por %p62, %p63
      %p65 = scmp.ne.s32.totalorder %s54, %s55
      %p66 = scmp.eq.s32.totalorder %s32, 0
      %p67 = por %p65, %p66
      %p68 = scmp.ne.s32.totalorder %s54, %s55
      %p69 = scmp.eq.s32.totalorder %s33, 1
      %p70 = por %p68, %p69
      %p72 = scmp.ne.s32.totalorder %s55, %s71
      %p73 = scmp.eq.s32.totalorder %s33, 0
      %p74 = por %p72, %p73
      %s75 = ssub.s32 %s34, %s46
      %s76 = ssub.s32 %s35, %s42
      %s77 = sor.u32 %s75, %s76
      %p78 = scmp.eq.s32.totalorder %s77, 0
      %s80 = sadd.s32 %s79, 1
      %s81 = scalar_select %p78, %s79, %s80
      %p84 = pneg %p78
      %p85 = scmp.eq.s32.totalorder %s27, 1
      %p86 = por %p84, %p85
      %p87 = scmp.ne.s32.totalorder %s79, %s82
      %p88 = scmp.eq.s32.totalorder %s27, 0
      %p89 = por %p87, %p88
      %p90 = scmp.ne.s32.totalorder %s79, %s82
      %p91 = scmp.eq.s32.totalorder %s32, 1
      %p92 = por %p90, %p91
      %p93 = scmp.ne.s32.totalorder %s82, %s83
      %p94 = scmp.eq.s32.totalorder %s32, 0
      %p95 = por %p93, %p94
      %p96 = scmp.ne.s32.totalorder %s82, %s83
      %p97 = scmp.eq.s32.totalorder %s33, 1
      %p98 = por %p96, %p97
      %p100 = scmp.ne.s32.totalorder %s83, %s99
      %p101 = scmp.eq.s32.totalorder %s33, 0
      %p102 = por %p100, %p101
      %s104 = sadd.s32 %s103, 1
      %p107 = scmp.eq.s32.totalorder %s27, 1
      %p108 = scmp.ne.s32.totalorder %s103, %s105
      %p109 = scmp.eq.s32.totalorder %s27, 0
      %p110 = por %p108, %p109
      %p111 = scmp.ne.s32.totalorder %s103, %s105
      %p112 = scmp.eq.s32.totalorder %s32, 1
      %p113 = por %p111, %p112
      %p114 = scmp.ne.s32.totalorder %s105, %s106
      %p115 = scmp.eq.s32.totalorder %s32, 0
      %p116 = por %p114, %p115
      %p117 = scmp.ne.s32.totalorder %s105, %s106
      %p118 = scmp.eq.s32.totalorder %s33, 1
      %p119 = por %p117, %p118
      %p121 = scmp.ne.s32.totalorder %s106, %s120
      %p122 = scmp.eq.s32.totalorder %s33, 0
      %p123 = por %p121, %p122
      %s125 = sadd.s32 %s124, 1
      %p128 = scmp.eq.s32.totalorder %s27, 1
      %p129 = scmp.ne.s32.totalorder %s124, %s126
      %p130 = scmp.eq.s32.totalorder %s27, 0
      %p131 = por %p129, %p130
      %p132 = scmp.ne.s32.totalorder %s124, %s126
      %p133 = scmp.eq.s32.totalorder %s32, 1
      %p134 = por %p132, %p133
      %p135 = scmp.ne.s32.totalorder %s126, %s127
      %p136 = scmp.eq.s32.totalorder %s32, 0
      %p137 = por %p135, %p136
      %p138 = scmp.ne.s32.totalorder %s126, %s127
      %p139 = scmp.eq.s32.totalorder %s33, 1
      %p140 = por %p138, %p139
      %p142 = scmp.ne.s32.totalorder %s127, %s141
      %p143 = scmp.eq.s32.totalorder %s33, 0
      %p144 = por %p142, %p143
      %s146 = sadd.s32 %s145, 1
      %p149 = scmp.eq.s32.totalorder %s27, 1
      %p150 = scmp.ne.s32.totalorder %s145, %s147
      %p151 = scmp.eq.s32.totalorder %s27, 0
      %p152 = por %p150, %p151
      %p153 = scmp.ne.s32.totalorder %s145, %s147
      %p154 = scmp.eq.s32.totalorder %s32, 1
      %p155 = por %p153, %p154
      %p156 = scmp.ne.s32.totalorder %s147, %s148
      %p157 = scmp.eq.s32.totalorder %s32, 0
      %p158 = por %p156, %p157
      %p159 = scmp.ne.s32.totalorder %s147, %s148
      %p160 = scmp.eq.s32.totalorder %s33, 1
      %p161 = por %p159, %p160
      %p163 = scmp.ne.s32.totalorder %s148, %s162
      %p164 = scmp.eq.s32.totalorder %s33, 0
      %p165 = por %p163, %p164
      %s167 = sadd.s32 %s166, 1
      %p170 = scmp.eq.s32.totalorder %s27, 1
      %p171 = scmp.ne.s32.totalorder %s166, %s168
      %p172 = scmp.eq.s32.totalorder %s27, 0
      %p173 = por %p171, %p172
      %p174 = scmp.ne.s32.totalorder %s166, %s168
      %p175 = scmp.eq.s32.totalorder %s32, 1
      %p176 = por %p174, %p175
      %p177 = scmp.ne.s32.totalorder %s168, %s169
      %p178 = scmp.eq.s32.totalorder %s32, 0
      %p179 = por %p177, %p178
      %p180 = scmp.ne.s32.totalorder %s168, %s169
      %p181 = scmp.eq.s32.totalorder %s33, 1
      %p182 = por %p180, %p181
      %p184 = scmp.ne.s32.totalorder %s169, %s183
      %p185 = scmp.eq.s32.totalorder %s33, 0
      %p186 = por %p184, %p185
      %s187 = ssub.s32 %s34, %s46
      %s188 = ssub.s32 %s35, %s42
      %s189 = sor.u32 %s187, %s188
      %p190 = scmp.eq.s32.totalorder %s189, 0
      %s192 = sadd.s32 %s191, 1
      %s193 = scalar_select %p190, %s191, %s192
      %p196 = pneg %p190
      %p197 = scmp.eq.s32.totalorder %s27, 1
      %p198 = por %p196, %p197
      %p199 = scmp.ne.s32.totalorder %s191, %s194
      %p200 = scmp.eq.s32.totalorder %s27, 0
      %p201 = por %p199, %p200
      %p202 = scmp.ne.s32.totalorder %s191, %s194
      %p203 = scmp.eq.s32.totalorder %s32, 1
      %p204 = por %p202, %p203
      %p205 = scmp.ne.s32.totalorder %s194, %s195
      %p206 = scmp.eq.s32.totalorder %s32, 0
      %p207 = por %p205, %p206
      %p208 = scmp.ne.s32.totalorder %s194, %s195
      %p209 = scmp.eq.s32.totalorder %s33, 1
      %p210 = por %p208, %p209
      %p212 = scmp.ne.s32.totalorder %s195, %s211
      %p213 = scmp.eq.s32.totalorder %s33, 0
      %p214 = por %p212, %p213
      %s215 = ssub.s32 %s34, %s46
      %s216 = ssub.s32 %s35, %s42
      %s217 = sor.u32 %s215, %s216
      %p218 = scmp.eq.s32.totalorder %s217, 0
      %s220 = sadd.s32 %s219, 1
      %s221 = scalar_select %p218, %s219, %s220
      %p224 = pneg %p218
      %p225 = scmp.eq.s32.totalorder %s27, 1
      %p226 = por %p224, %p225
      %p227 = scmp.ne.s32.totalorder %s219, %s222
      %p228 = scmp.eq.s32.totalorder %s27, 0
      %p229 = por %p227, %p228
      %p230 = scmp.ne.s32.totalorder %s219, %s222
      %p231 = scmp.eq.s32.totalorder %s32, 1
      %p232 = por %p230, %p231
      %p233 = scmp.ne.s32.totalorder %s222, %s223
      %p234 = scmp.eq.s32.totalorder %s32, 0
      %p235 = por %p233, %p234
      %p236 = scmp.ne.s32.totalorder %s222, %s223
      %p237 = scmp.eq.s32.totalorder %s33, 1
      %p238 = por %p236, %p237
      %p240 = scmp.ne.s32.totalorder %s223, %s239
      %p241 = scmp.eq.s32.totalorder %s33, 0
      %p242 = por %p240, %p241
      %p243 = scmp.le.s32.totalorder 1, %s27
      %p244 = scmp.lt.s32.totalorder %s27, 3
      %p245 = pnand %p243, %p244
      %p246 = pneg %p245
      // Predicated region
      $region9: #{tpu_custom_call.1} parent=5 // pred_check
        _
      $region10: #{tpu_custom_call.1} parent=5 // pred_check_branch
        %248 = sbr.rel (%p245) target = $region12
      $region11: #{tpu_custom_call.1} parent=5 // pred_region
        %s249 = ssub.s32 %s27, 1
        // Predicated region
        $region13: #{tpu_custom_call.1} parent=11 // pred_check
          %p250 = pneg %p116
        $region14: #{tpu_custom_call.1} parent=11 // pred_check_branch
          %252 = sbr.rel (%p250) target = $region16
        $region15: #{tpu_custom_call.1} parent=11 // pred_region
          %s254 = ssub.s32 2048, 2048
          %255 = vsyncadd [#allocation6], %s254
          %s256 = sshll.u32 [#allocation7], 4
          %s257 = int_to_ptr.vmem [resolvable:$true] %s256
          %262 = dma.hbm_to_vmem [thread:$0]  %s2, 2048, %s257, [#allocation6], 128, 128, 8
        $region16: #{tpu_custom_call.1} parent=11 // pred_fallthru
          _
        // Predicated region
        $region17: #{tpu_custom_call.1} parent=11 // pred_check
          %p263 = pneg %p137
        $region18: #{tpu_custom_call.1} parent=11 // pred_check_branch
          %265 = sbr.rel (%p263) target = $region20
        $region19: #{tpu_custom_call.1} parent=11 // pred_region
          _
        $region20: #{tpu_custom_call.1} parent=11 // pred_fallthru
          _
        // Predicated region
        $region21: #{tpu_custom_call.1} parent=11 // pred_check
          %p266 = pneg %p158
        $region22: #{tpu_custom_call.1} parent=11 // pred_check_branch
          %268 = sbr.rel (%p266) target = $region24
        $region23: #{tpu_custom_call.1} parent=11 // pred_region
          %s270 = ssub.s32 2048, 2048
          %271 = vsyncadd [#allocation9], %s270
          %s272 = sshll.u32 [#allocation8], 4
          %s273 = int_to_ptr.vmem [resolvable:$true] %s272
          %278 = dma.hbm_to_vmem [thread:$0]  %s4, 2048, %s273, [#allocation9], 128, 128, 8
        $region24: #{tpu_custom_call.1} parent=11 // pred_fallthru
          _
        // Predicated region
        $region25: #{tpu_custom_call.1} parent=11 // pred_check
          %p279 = pneg %p179
        $region26: #{tpu_custom_call.1} parent=11 // pred_check_branch
          %281 = sbr.rel (%p279) target = $region28
        $region27: #{tpu_custom_call.1} parent=11 // pred_region
          _
        $region28: #{tpu_custom_call.1} parent=11 // pred_fallthru
          _
      $region12: #{tpu_custom_call.1} parent=5 // pred_fallthru
        _
      %p282 = scmp.lt.s32.totalorder %s27, 2
      // Predicated region
      $region29: #{tpu_custom_call.1} parent=5 // pred_check
        %p283 = pneg %p282
      $region30: #{tpu_custom_call.1} parent=5 // pred_check_branch
        %285 = sbr.rel (%p283) target = $region32
      $region31: #{tpu_custom_call.1} parent=5 // pred_region
        // Predicated region
        $region33: #{tpu_custom_call.1} parent=31 // pred_check
          %p286 = pneg %p61
        $region34: #{tpu_custom_call.1} parent=31 // pred_check_branch
          %288 = sbr.rel (%p286) target = $region36
        $region35: #{tpu_custom_call.1} parent=31 // pred_region
          %s289 = sand.u32 %s51, 1
          %s290 = scalar_lea.sflag [#allocation3], %s289
          %s291 = sand.u32 %s51, 1
          %s292 = smul.addr %s291, 8
          %s293 = scalar_lea.vmem [#allocation2], %s292
          %s295 = ssub.s32 128, 128
          %296 = vsyncadd %s290, %s295
          %s297 = sadd.s32 %s35, %s34
          %s298 = smul.addr %s297, 128
          %s299 = scalar_lea.hbm %s0, %s298
          %s301 = sshll.u32 %s293, 4
          %s302 = int_to_ptr.vmem [resolvable:$true] %s301
          %304 = dma.hbm_to_vmem [thread:$0]  %s299, 128, %s302, %s290
        $region36: #{tpu_custom_call.1} parent=31 // pred_fallthru
          _
        // Predicated region
        $region37: #{tpu_custom_call.1} parent=31 // pred_check
          %p305 = pneg %p89
        $region38: #{tpu_custom_call.1} parent=31 // pred_check_branch
          %307 = sbr.rel (%p305) target = $region40
        $region39: #{tpu_custom_call.1} parent=31 // pred_region
          %s308 = sand.u32 %s27, 1
          %s309 = scalar_lea.sflag [#allocation6], %s308
          %s310 = sand.u32 %s79, 1
          %s311 = smul.addr %s310, 8
          %s312 = scalar_lea.vmem [#allocation5], %s311
          %s314 = ssub.s32 128, 128
          %315 = vsyncadd %s309, %s314
          %s316 = sadd.s32 %s35, %s34
          %s317 = smul.addr %s316, 128
          %s318 = scalar_lea.hbm %s1, %s317
          %s320 = sshll.u32 %s312, 4
          %s321 = int_to_ptr.vmem [resolvable:$true] %s320
          %323 = dma.hbm_to_vmem [thread:$0]  %s318, 128, %s321, %s309
        $region40: #{tpu_custom_call.1} parent=31 // pred_fallthru
          _
      $region32: #{tpu_custom_call.1} parent=5 // pred_fallthru
        _
      %p324 = scmp.le.s32.totalorder 1, %s27
      %p325 = scmp.lt.s32.totalorder %s27, 3
      %p326 = pnand %p324, %p325
      %p327 = pneg %p326
      // Predicated region
      $region41: #{tpu_custom_call.1} parent=5 // pred_check
        _
      $region42: #{tpu_custom_call.1} parent=5 // pred_check_branch
        %329 = sbr.rel (%p326) target = $region44
      $region43: #{tpu_custom_call.1} parent=5 // pred_region
        %s330 = ssub.s32 %s27, 1
        %s331 = sand.u32 %s54, 1
        %s332 = scalar_lea.sflag [#allocation3], %s331
        %s333 = sand.u32 %s54, 1
        %s334 = smul.addr %s333, 8
        %s335 = scalar_lea.vmem [#allocation2], %s334
        // Predicated region
        $region45: #{tpu_custom_call.1} parent=43 // pred_check
          %p336 = pneg %p67
        $region46: #{tpu_custom_call.1} parent=43 // pred_check_branch
          %338 = sbr.rel (%p336) target = $region48
        $region47: #{tpu_custom_call.1} parent=43 // pred_region
          %339 = dma.done %s332, 128
        $region48: #{tpu_custom_call.1} parent=43 // pred_fallthru
          _
        %s340 = sand.u32 %s32, 1
        %s341 = scalar_lea.sflag [#allocation6], %s340
        %s342 = sand.u32 %s82, 1
        %s343 = smul.addr %s342, 8
        %s344 = scalar_lea.vmem [#allocation5], %s343
        // Predicated region
        $region49: #{tpu_custom_call.1} parent=43 // pred_check
          %p345 = pneg %p95
        $region50: #{tpu_custom_call.1} parent=43 // pred_check_branch
          %347 = sbr.rel (%p345) target = $region52
        $region51: #{tpu_custom_call.1} parent=43 // pred_region
          %348 = dma.done %s341, 128
        $region52: #{tpu_custom_call.1} parent=43 // pred_fallthru
          _
        // Predicated region
        $region53: #{tpu_custom_call.1} parent=43 // pred_check
          %p349 = pneg %p116
        $region54: #{tpu_custom_call.1} parent=43 // pred_check_branch
          %351 = sbr.rel (%p349) target = $region56
        $region55: #{tpu_custom_call.1} parent=43 // pred_region
          %352 = dma.done [#allocation6], 2048
        $region56: #{tpu_custom_call.1} parent=43 // pred_fallthru
          _
        // Predicated region
        $region57: #{tpu_custom_call.1} parent=43 // pred_check
          %p353 = pneg %p158
        $region58: #{tpu_custom_call.1} parent=43 // pred_check_branch
          %355 = sbr.rel (%p353) target = $region60
        $region59: #{tpu_custom_call.1} parent=43 // pred_region
          %356 = dma.done [#allocation9], 2048
        $region60: #{tpu_custom_call.1} parent=43 // pred_fallthru
          _
        %s357 = sand.u32 %s54, 1
        %s358 = scalar_lea.sflag [#allocation3], %s357
        %s359 = sand.u32 %s54, 1
        %s360 = smul.addr %s359, 8
        %s361 = scalar_lea.vmem [#allocation2], %s360
        %p362 = pneg %p67
        %p363 = pneg %p64
        %s364 = sand.u32 %s32, 1
        %s365 = scalar_lea.sflag [#allocation6], %s364
        %s366 = sand.u32 %s82, 1
        %s367 = smul.addr %s366, 8
        %s368 = scalar_lea.vmem [#allocation5], %s367
        %p369 = pneg %p95
        %p370 = pneg %p92
        %p371 = pneg %p116
        %p372 = pneg %p113
        %p373 = pneg %p137
        %p374 = pneg %p134
        %p375 = pneg %p158
        %p376 = pneg %p155
        %p377 = pneg %p179
        %p378 = pneg %p176
        %p379 = pneg %p207
        %p380 = pneg %p204
        %s381 = sand.u32 %s194, 1
        %s382 = scalar_lea.sflag [#allocation4], %s381
        %s383 = sand.u32 %s194, 1
        %s384 = smul.addr %s383, 8
        %s385 = scalar_lea.vmem [#allocation10], %s384
        %p386 = pneg %p235
        %p387 = pneg %p232
        %s388 = sand.u32 %s222, 1
        %s389 = scalar_lea.sflag [#allocation12], %s388
        %s390 = sand.u32 %s222, 1
        %s391 = smul.addr %s390, 8
        %s392 = scalar_lea.vmem [#allocation11], %s391
        %v393 = vld [vmem:[%s335] sm:$0xff]
        %v394 = vld [vmem:[#allocation7] sm:$0xff]
        %v395 = vld [vmem:[#allocation7 + $0x8] sm:$0xff]
        %v396 = vld [vmem:[#allocation7 + $0x10] sm:$0xff]
        %v397 = vld [vmem:[#allocation7 + $0x18] sm:$0xff]
        %v398 = vld [vmem:[#allocation7 + $0x20] sm:$0xff]
        %v399 = vld [vmem:[#allocation7 + $0x28] sm:$0xff]
        %v400 = vld [vmem:[#allocation7 + $0x30] sm:$0xff]
        %v401 = vld [vmem:[#allocation7 + $0x38] sm:$0xff]
        %v402 = vld [vmem:[#allocation7 + $0x40] sm:$0xff]
        %v403 = vld [vmem:[#allocation7 + $0x48] sm:$0xff]
        %v404 = vld [vmem:[#allocation7 + $0x50] sm:$0xff]
        %v405 = vld [vmem:[#allocation7 + $0x58] sm:$0xff]
        %v406 = vld [vmem:[#allocation7 + $0x60] sm:$0xff]
        %v407 = vld [vmem:[#allocation7 + $0x68] sm:$0xff]
        %v408 = vld [vmem:[#allocation7 + $0x70] sm:$0xff]
        %v409 = vld [vmem:[#allocation7 + $0x78] sm:$0xff]
        %v410 = vld [vmem:[%s3] sm:$0x1]
        %v412 = vlaneseq
        %v413 = vshrl.u32 %v412, 7
        %v414 = vsub.s32 0, %v413
        %v415 = vrot.slane %v410, %v414
        %417 = vmatprep.subr.mxu0 0.0
        %418 = vmatpush1.msra.mxu0 %v394
        %419 = vmatprep.subr.mxu0 0.0
        %420 = vmatpush1.msra.mxu0 %v395
        %421 = vmatprep.subr.mxu0 0.0
        %422 = vmatpush1.msra.mxu0 %v396
        %423 = vmatprep.subr.mxu0 0.0
        %424 = vmatpush1.msra.mxu0 %v397
        %425 = vmatprep.subr.mxu0 0.0
        %426 = vmatpush1.msra.mxu0 %v398
        %427 = vmatprep.subr.mxu0 0.0
        %428 = vmatpush1.msra.mxu0 %v399
        %429 = vmatprep.subr.mxu0 0.0
        %430 = vmatpush1.msra.mxu0 %v400
        %431 = vmatprep.subr.mxu0 0.0
        %432 = vmatpush1.msra.mxu0 %v401
        %433 = vmatprep.subr.mxu0 0.0
        %434 = vmatpush1.msra.mxu0 %v402
        %435 = vmatprep.subr.mxu0 0.0
        %436 = vmatpush1.msra.mxu0 %v403
        %437 = vmatprep.subr.mxu0 0.0
        %438 = vmatpush1.msra.mxu0 %v404
        %439 = vmatprep.subr.mxu0 0.0
        %440 = vmatpush1.msra.mxu0 %v405
        %441 = vmatprep.subr.mxu0 0.0
        %442 = vmatpush1.msra.mxu0 %v406
        %443 = vmatprep.subr.mxu0 0.0
        %444 = vmatpush1.msra.mxu0 %v407
        %445 = vmatprep.subr.mxu0 0.0
        %446 = vmatpush1.msra.mxu0 %v408
        %447 = vmatprep.subr.mxu0 0.0
        %448 = vmatpush1.msra.mxu0 %v409
        %449 = vmatprep.subr.mxu0 0.0
        %450 = vmatpush1.msra.mxu0 0.0
        %451 = vmatprep.subr.mxu0 0.0
        %452 = vmatpush1.msra.mxu0 0.0
        %453 = vmatprep.subr.mxu0 0.0
        %454 = vmatpush1.msra.mxu0 0.0
        %455 = vmatprep.subr.mxu0 0.0
        %456 = vmatpush1.msra.mxu0 0.0
        %457 = vmatprep.subr.mxu0 0.0
        %458 = vmatpush1.msra.mxu0 0.0
        %459 = vmatprep.subr.mxu0 0.0
        %460 = vmatpush1.msra.mxu0 0.0
        %461 = vmatprep.subr.mxu0 0.0
        %462 = vmatpush1.msra.mxu0 0.0
        %463 = vmatprep.subr.mxu0 0.0
        %464 = vmatpush1.msra.mxu0 0.0
        %465 = vmatprep.subr.mxu0 0.0
        %466 = vmatpush1.msra.mxu0 0.0
        %467 = vmatprep.subr.mxu0 0.0
        %468 = vmatpush1.msra.mxu0 0.0
        %469 = vmatprep.subr.mxu0 0.0
        %470 = vmatpush1.msra.mxu0 0.0
        %471 = vmatprep.subr.mxu0 0.0
        %472 = vmatpush1.msra.mxu0 0.0
        %473 = vmatprep.subr.mxu0 0.0
        %474 = vmatpush1.msra.mxu0 0.0
        %475 = vmatprep.subr.mxu0 0.0
        %476 = vmatpush1.msra.mxu0 0.0
        %477 = vmatprep.subr.mxu0 0.0
        %478 = vmatpush1.msra.mxu0 0.0
        %479 = vmatprep.subr.mxu0 0.0
        %480 = vmatpush1.msra.mxu0 0.0
        %481 = vmatprep.mubr.f32.mxu0 0.0
        %482 = vmatmul.mubr.f32.gmra.mrb[0].mxu0 %v393
        %v483 = vpop.f32.mrb[0].mxu0
        %v484 = vadd.f32 %v415, %v483
        %v485 = vpop.f32.mrb[0].mxu0
        %486 = vdwg.mxu0
        %v487 = vmax.f32 %v484, 0.0
        %488 = vst [vmem:[%s385] sm:$0xff] %v487
        %v489 = vld [vmem:[%s344] sm:$0xff]
        %v490 = vld [vmem:[#allocation8] sm:$0xff]
        %v491 = vld [vmem:[#allocation8 + $0x8] sm:$0xff]
        %v492 = vld [vmem:[#allocation8 + $0x10] sm:$0xff]
        %v493 = vld [vmem:[#allocation8 + $0x18] sm:$0xff]
        %v494 = vld [vmem:[#allocation8 + $0x20] sm:$0xff]
        %v495 = vld [vmem:[#allocation8 + $0x28] sm:$0xff]
        %v496 = vld [vmem:[#allocation8 + $0x30] sm:$0xff]
        %v497 = vld [vmem:[#allocation8 + $0x38] sm:$0xff]
        %v498 = vld [vmem:[#allocation8 + $0x40] sm:$0xff]
        %v499 = vld [vmem:[#allocation8 + $0x48] sm:$0xff]
        %v500 = vld [vmem:[#allocation8 + $0x50] sm:$0xff]
        %v501 = vld [vmem:[#allocation8 + $0x58] sm:$0xff]
        %v502 = vld [vmem:[#allocation8 + $0x60] sm:$0xff]
        %v503 = vld [vmem:[#allocation8 + $0x68] sm:$0xff]
        %v504 = vld [vmem:[#allocation8 + $0x70] sm:$0xff]
        %v505 = vld [vmem:[#allocation8 + $0x78] sm:$0xff]
        %v506 = vld [vmem:[%s5] sm:$0x1]
        %v508 = vlaneseq
        %v509 = vshrl.u32 %v508, 7
        %v510 = vsub.s32 0, %v509
        %v511 = vrot.slane %v506, %v510
        %513 = vmatprep.subr.mxu0 0.0
        %514 = vmatpush1.msra.mxu0 %v490
        %515 = vmatprep.subr.mxu0 0.0
        %516 = vmatpush1.msra.mxu0 %v491
        %517 = vmatprep.subr.mxu0 0.0
        %518 = vmatpush1.msra.mxu0 %v492
        %519 = vmatprep.subr.mxu0 0.0
        %520 = vmatpush1.msra.mxu0 %v493
        %521 = vmatprep.subr.mxu0 0.0
        %522 = vmatpush1.msra.mxu0 %v494
        %523 = vmatprep.subr.mxu0 0.0
        %524 = vmatpush1.msra.mxu0 %v495
        %525 = vmatprep.subr.mxu0 0.0
        %526 = vmatpush1.msra.mxu0 %v496
        %527 = vmatprep.subr.mxu0 0.0
        %528 = vmatpush1.msra.mxu0 %v497
        %529 = vmatprep.subr.mxu0 0.0
        %530 = vmatpush1.msra.mxu0 %v498
        %531 = vmatprep.subr.mxu0 0.0
        %532 = vmatpush1.msra.mxu0 %v499
        %533 = vmatprep.subr.mxu0 0.0
        %534 = vmatpush1.msra.mxu0 %v500
        %535 = vmatprep.subr.mxu0 0.0
        %536 = vmatpush1.msra.mxu0 %v501
        %537 = vmatprep.subr.mxu0 0.0
        %538 = vmatpush1.msra.mxu0 %v502
        %539 = vmatprep.subr.mxu0 0.0
        %540 = vmatpush1.msra.mxu0 %v503
        %541 = vmatprep.subr.mxu0 0.0
        %542 = vmatpush1.msra.mxu0 %v504
        %543 = vmatprep.subr.mxu0 0.0
        %544 = vmatpush1.msra.mxu0 %v505
        %545 = vmatprep.subr.mxu0 0.0
        %546 = vmatpush1.msra.mxu0 0.0
        %547 = vmatprep.subr.mxu0 0.0
        %548 = vmatpush1.msra.mxu0 0.0
        %549 = vmatprep.subr.mxu0 0.0
        %550 = vmatpush1.msra.mxu0 0.0
        %551 = vmatprep.subr.mxu0 0.0
        %552 = vmatpush1.msra.mxu0 0.0
        %553 = vmatprep.subr.mxu0 0.0
        %554 = vmatpush1.msra.mxu0 0.0
        %555 = vmatprep.subr.mxu0 0.0
        %556 = vmatpush1.msra.mxu0 0.0
        %557 = vmatprep.subr.mxu0 0.0
        %558 = vmatpush1.msra.mxu0 0.0
        %559 = vmatprep.subr.mxu0 0.0
        %560 = vmatpush1.msra.mxu0 0.0
        %561 = vmatprep.subr.mxu0 0.0
        %562 = vmatpush1.msra.mxu0 0.0
        %563 = vmatprep.subr.mxu0 0.0
        %564 = vmatpush1.msra.mxu0 0.0
        %565 = vmatprep.subr.mxu0 0.0
        %566 = vmatpush1.msra.mxu0 0.0
        %567 = vmatprep.subr.mxu0 0.0
        %568 = vmatpush1.msra.mxu0 0.0
        %569 = vmatprep.subr.mxu0 0.0
        %570 = vmatpush1.msra.mxu0 0.0
        %571 = vmatprep.subr.mxu0 0.0
        %572 = vmatpush1.msra.mxu0 0.0
        %573 = vmatprep.subr.mxu0 0.0
        %574 = vmatpush1.msra.mxu0 0.0
        %575 = vmatprep.subr.mxu0 0.0
        %576 = vmatpush1.msra.mxu0 0.0
        %577 = vmatprep.mubr.f32.mxu0 0.0
        %578 = vmatmul.mubr.f32.gmra.mrb[0].mxu0 %v489
        %v579 = vpop.f32.mrb[0].mxu0
        %v580 = vadd.f32 %v511, %v579
        %v581 = vpop.f32.mrb[0].mxu0
        %582 = vdwg.mxu0
        %v583 = vmax.f32 %v580, 0.0
        %584 = vst [vmem:[%s392] sm:$0xff] %v583
        %s585 = sand.u32 %s194, 1
        %s586 = scalar_lea.sflag [#allocation4], %s585
        %s587 = sand.u32 %s194, 1
        %s588 = smul.addr %s587, 8
        %s589 = scalar_lea.vmem [#allocation10], %s588
        %s590 = sand.u32 %s222, 1
        %s591 = scalar_lea.sflag [#allocation12], %s590
        %s592 = sand.u32 %s222, 1
        %s593 = smul.addr %s592, 8
        %s594 = scalar_lea.vmem [#allocation11], %s593
        // Predicated region
        $region61: #{tpu_custom_call.1} parent=43 // pred_check
          %p595 = pneg %p204
        $region62: #{tpu_custom_call.1} parent=43 // pred_check_branch
          %597 = sbr.rel (%p595) target = $region64
        $region63: #{tpu_custom_call.1} parent=43 // pred_region
          %s599 = ssub.s32 128, 128
          %600 = vsyncadd %s586, %s599
          %s601 = sadd.s32 %s37, %s36
          %s602 = smul.addr %s601, 128
          %s603 = scalar_lea.hbm %s6, %s602
          %s605 = sshll.u32 %s589, 4
          %s606 = int_to_ptr.vmem [resolvable:$true] %s605
          %608 = dma.vmem_to_hbm [thread:$0]  %s606, 128, %s603, %s586
        $region64: #{tpu_custom_call.1} parent=43 // pred_fallthru
          _
        // Predicated region
        $region65: #{tpu_custom_call.1} parent=43 // pred_check
          %p609 = pneg %p232
        $region66: #{tpu_custom_call.1} parent=43 // pred_check_branch
          %611 = sbr.rel (%p609) target = $region68
        $region67: #{tpu_custom_call.1} parent=43 // pred_region
          %s613 = ssub.s32 128, 128
          %614 = vsyncadd %s591, %s613
          %s615 = sadd.s32 %s37, %s36
          %s616 = smul.addr %s615, 128
          %s617 = scalar_lea.hbm %s7, %s616
          %s619 = sshll.u32 %s594, 4
          %s620 = int_to_ptr.vmem [resolvable:$true] %s619
          %622 = dma.vmem_to_hbm [thread:$0]  %s620, 128, %s617, %s591
        $region68: #{tpu_custom_call.1} parent=43 // pred_fallthru
          _
      $region44: #{tpu_custom_call.1} parent=5 // pred_fallthru
        _
      %p623 = scmp.le.s32.totalorder 2, %s27
      // Predicated region
      $region69: #{tpu_custom_call.1} parent=5 // pred_check
        %p624 = pneg %p623
      $region70: #{tpu_custom_call.1} parent=5 // pred_check_branch
        %626 = sbr.rel (%p624) target = $region72
      $region71: #{tpu_custom_call.1} parent=5 // pred_region
        %s627 = ssub.s32 %s27, 2
        // Predicated region
        $region73: #{tpu_custom_call.1} parent=71 // pred_check
          %p628 = pneg %p210
        $region74: #{tpu_custom_call.1} parent=71 // pred_check_branch
          %630 = sbr.rel (%p628) target = $region76
        $region75: #{tpu_custom_call.1} parent=71 // pred_region
          %s631 = sand.u32 %s195, 1
          %s632 = scalar_lea.sflag [#allocation4], %s631
          %s633 = sand.u32 %s195, 1
          %s634 = smul.addr %s633, 8
          %s635 = scalar_lea.vmem [#allocation10], %s634
          %636 = dma.done %s632, 128
        $region76: #{tpu_custom_call.1} parent=71 // pred_fallthru
          _
        // Predicated region
        $region77: #{tpu_custom_call.1} parent=71 // pred_check
          %p637 = pneg %p238
        $region78: #{tpu_custom_call.1} parent=71 // pred_check_branch
          %639 = sbr.rel (%p637) target = $region80
        $region79: #{tpu_custom_call.1} parent=71 // pred_region
          %s640 = sand.u32 %s223, 1
          %s641 = scalar_lea.sflag [#allocation12], %s640
          %s642 = sand.u32 %s223, 1
          %s643 = smul.addr %s642, 8
          %s644 = scalar_lea.vmem [#allocation11], %s643
          %645 = dma.done %s641, 128
        $region80: #{tpu_custom_call.1} parent=71 // pred_fallthru
          _
      $region72: #{tpu_custom_call.1} parent=5 // pred_fallthru
        _
    $region6: #{tpu_custom_call.1} parent=1 // loop_footer
      %s31 = sadd.s32 1, %s27
    $region7: #{tpu_custom_call.1} parent=1 // loop_footer_branch
      %26 = sbr.rel target = $region3
    $region8: #{tpu_custom_call.1} parent=1 // loop_exit
      _
    %646 = vsyncpa [#allocation3], 1
    %s647 = scalar_lea.sflag [#allocation3], 1
    %648 = vsyncpa %s647, 1
    %649 = vsyncpa [#allocation6], 1
    %s650 = scalar_lea.sflag [#allocation6], 1
    %651 = vsyncpa %s650, 1
    %652 = vsyncpa [#allocation9], 1
    %653 = vsyncpa [#allocation4], 1
    %s654 = scalar_lea.sflag [#allocation4], 1
    %655 = vsyncpa %s654, 1
    %656 = vsyncpa [#allocation12], 1
    %s657 = scalar_lea.sflag [#allocation12], 1
    %658 = vsyncpa %s657, 1

</llo_original>
